<compile_context>
chip_gen: v5e
topology: v5e:2x2
jax: 0.10.0
libtpu: 0.0.40
codegen_flags: <defaults>
</compile_context>

<pallas_src>
import functools

import jax
import jax.numpy as jnp
import numpy as np
from jax.experimental import pallas as pl
from jax.experimental.pallas import tpu as pltpu


def _round_up(x: int, m: int) -> int:
    return ((x + m - 1) // m) * m


def _silu(x):
    return x * jax.nn.sigmoid(x)


def _cond_emb_kernel(*refs):
    """One batch tile: out = onehot(labels) @ folded_table (single MXU op).

    refs = (lab_ref_0, ..., lab_ref_{G-1}, table_ref, out_ref)
      lab_ref_j : (rows, 1) int32  label for packed slot j of each output row
      table_ref : (G*V, L) f32     block-diagonal folded MLP table (resident)
      out_ref   : (rows, L)        L = 128 (packed, dim<128) or L = dim
    """
    lab_refs, table_ref, out_ref = refs[:-2], refs[-2], refs[-1]
    g = len(lab_refs)
    gv = table_ref.shape[0]
    v = gv // g
    rows = out_ref.shape[0]

    col = jax.lax.broadcasted_iota(jnp.int32, (rows, gv), 1)
    onehot = jnp.zeros((rows, gv), jnp.float32)
    for j, lref in enumerate(lab_refs):                 # static loop, G <= 16
        lab_j = lref[...]                               # (rows, 1) int32
        # Column j*V + lab selects table row (group j, vocab lab); invalid
        # labels contribute nothing (zero row, like the padding embedding).
        hit = (col == lab_j + j * v) & (lab_j >= 0) & (lab_j < v)
        onehot = onehot + hit.astype(jnp.float32)

    out = jnp.dot(onehot, table_ref[...], preferred_element_type=jnp.float32)
    out_ref[...] = out.astype(out_ref.dtype)


def fold_params(params):
    """Fold the whole module into a per-label table (off the forward hot path).

    table[v] = SiLU(emb[v] @ W1 + b1) @ W2 + b2   -> [V, dim]
    If dim < 128 and divides 128, expand to a block-diagonal [G*V, 128] table so
    the kernel's output tile is lane-dense (G = 128 // dim rows packed per
    128-lane output row).
    """
    h = params["emb"] @ params["w1"] + params["b1"]
    table = _silu(h) @ params["w2"] + params["b2"]                  # [V, dim]
    dim = table.shape[1]
    if dim < 128 and 128 % dim == 0:
        g = 128 // dim
        table = jnp.kron(jnp.eye(g, dtype=table.dtype), table)     # [g*V, 128]
    return table


@functools.partial(jax.jit, static_argnames=("dim", "block_b", "out_dtype"))
def conditional_embedding(labels, table, *, dim, block_b=512,
                          out_dtype=jnp.float32):
    """labels: int [B]; table: fold_params(...) output.  Returns [B, dim]."""
    B = labels.shape[0]
    GV, L = table.shape
    assert L % dim == 0 and L >= dim
    G = L // dim                     # batch rows packed per output row
    quantum = 8 * G                  # sublane-divisible batch-tile quantum

    # Batch tile: always a multiple of `quantum`; cap so the grid has >= 2
    # steps when the batch allows (both v7x TensorCores get work).
    TB = _round_up(max(1, min(block_b, B)), quantum)
    n_quanta = _round_up(B, quantum) // quantum
    if n_quanta >= 2:
        TB = min(TB, ((n_quanta + 1) // 2) * quantum)
    Bp = _round_up(B, TB)
    grid = (Bp // TB,)
    rows_per_tile = TB // G

    # Pad with the padding label (0); padded rows are sliced off at the end.
    lab = jnp.pad(labels.astype(jnp.int32), (0, Bp - B))
    lab2d = lab.reshape(Bp // G, G)
    lab_cols = [lab2d[:, j:j + 1] for j in range(G)]     # G x (Bp//G, 1)

    lab_spec = pl.BlockSpec((rows_per_tile, 1), lambda i: (i, 0))
    in_specs = [lab_spec] * G + [pl.BlockSpec((GV, L), lambda i: (0, 0))]

    out_isize = np.dtype(out_dtype).itemsize
    cost = pl.CostEstimate(
        flops=2 * (Bp // G) * GV * L,
        transcendentals=0,
        bytes_accessed=Bp * 4 + GV * L * 4 + (Bp // G) * L * out_isize,
    )
    # Tight VMEM bound: double-buffered label/out tiles + resident table
    # (kept as 2 buffers even with a constant index_map), plus headroom.
    vmem_bytes = 2 * (rows_per_tile * G * 4 + GV * L * 4
                      + rows_per_tile * L * out_isize)
    vmem_limit = int(max(4 * 1024 * 1024, 2 * vmem_bytes))

    out = pl.pallas_call(
        _cond_emb_kernel,
        out_shape=jax.ShapeDtypeStruct((Bp // G, L), out_dtype),
        grid=grid,
        in_specs=in_specs,
        out_specs=pl.BlockSpec((rows_per_tile, L), lambda i: (i, 0)),
        compiler_params=pltpu.CompilerParams(
            dimension_semantics=("parallel",),        # megacore on v7x
            vmem_limit_bytes=vmem_limit,
        ),
        cost_estimate=cost,
    )(*lab_cols, table)

    # (Bp//G, L) and (Bp, dim) are the same row-major bytes -> free reshape.
    return out.reshape(Bp, dim)[:B]


def init_params(key, num_labels, d_model, dim):
    ks = jax.random.split(key, 5)
    s = 0.02
    emb = jax.random.normal(ks[0], (num_labels + 1, d_model), jnp.float32) * s
    emb = emb.at[0].set(0.0)                     # padding_idx=0 -> zero row
    w1 = jax.random.normal(ks[1], (d_model, dim), jnp.float32) * s
    b1 = jax.random.normal(ks[2], (1, dim), jnp.float32) * s
    w2 = jax.random.normal(ks[3], (dim, dim), jnp.float32) * s
    b2 = jax.random.normal(ks[4], (1, dim), jnp.float32) * s
    return dict(emb=emb, w1=w1, b1=b1, w2=w2, b2=b2)


def reference(labels, params):
    """Pure-JAX reference reproducing the PyTorch forward (unfolded weights)."""
    e = params["emb"][labels]                        # nn.Embedding lookup
    h = _silu(e @ params["w1"] + params["b1"])       # Linear1 + SiLU
    return h @ params["w2"] + params["b2"]           # Linear2


if __name__ == "__main__":
    key = jax.random.PRNGKey(0)
    k1, k2, k3, k4 = jax.random.split(key, 4)

    # --- Config 1: dim < 128 -> packed lane-dense output path (G = 4). -------
    num_labels, d_model, dim = 10, 32, 32
    B = 72                                   # pads to 96 -> grid of 3 tiles
    params = init_params(k1, num_labels, d_model, dim)
    labels = jax.random.randint(k2, (B,), 0, num_labels + 1, dtype=jnp.int32)
    table = fold_params(params)
    out = jax.block_until_ready(
        conditional_embedding(labels, table, dim=dim, block_b=32))
    np.testing.assert_allclose(np.asarray(out),
                               np.asarray(reference(labels, params)),
                               rtol=1e-5, atol=1e-5)

    # --- Config 2: dim = 128 -> plain path (G = 1), >= 2 parallel tiles. -----
    num_labels2, d_model2, dim2 = 6, 16, 128
    B2 = 16                                  # TB capped to 8 -> grid of 2
    params2 = init_params(k3, num_labels2, d_model2, dim2)
    labels2 = jax.random.randint(k4, (B2,), 0, num_labels2 + 1, dtype=jnp.int32)
    table2 = fold_params(params2)
    out2 = jax.block_until_ready(
        conditional_embedding(labels2, table2, dim=dim2))
    np.testing.assert_allclose(np.asarray(out2),
                               np.asarray(reference(labels2, params2)),
                               rtol=1e-5, atol=1e-5)

    print("KERNEL_OK")
</pallas_src>

<mosaic_0001>
module attributes {stable_mosaic.version = 11 : i64} {
  func.func @_cond_emb_kernel(%arg0: i32, %arg1: memref<8x1xi32, #tpu.memory_space<vmem>>, %arg2: memref<8x1xi32, #tpu.memory_space<vmem>>, %arg3: memref<8x1xi32, #tpu.memory_space<vmem>>, %arg4: memref<8x1xi32, #tpu.memory_space<vmem>>, %arg5: memref<44x128xf32, #tpu.memory_space<vmem>>, %arg6: memref<8x128xf32, #tpu.memory_space<vmem>>) attributes {dimension_semantics = [#tpu.dimension_semantics<parallel>], iteration_bounds = array<i64: 3>, scalar_prefetch = 0 : i64, scratch_operands = 0 : i64, tpu.core_type = #tpu.core_type<tc>, window_params = [{transform_indices = @transform_0, window_bounds = array<i64: 8, 1>}, {transform_indices = @transform_1, window_bounds = array<i64: 8, 1>}, {transform_indices = @transform_2, window_bounds = array<i64: 8, 1>}, {transform_indices = @transform_3, window_bounds = array<i64: 8, 1>}, {pipeline_mode = #tpu.pipeline_mode<synchronous>, transform_indices = @transform_4, window_bounds = array<i64: 44, 128>}, {transform_indices = @transform_5, window_bounds = array<i64: 8, 128>}]} {
    %0 = tpu.iota {dimensions = array<i32: 1>} : vector<8x44xi32>
    %cst = arith.constant 0.000000e+00 : f32
    %1 = vector.broadcast %cst : f32 to vector<8x44xf32>
    %c0 = arith.constant 0 : index
    %c0_0 = arith.constant 0 : index
    %2 = vector.load %arg1[%c0, %c0_0] : memref<8x1xi32, #tpu.memory_space<vmem>>, vector<8x1xi32>
    %c0_i32 = arith.constant 0 : i32
    %3 = vector.broadcast %c0_i32 : i32 to vector<8x1xi32>
    %4 = arith.addi %2, %3 : vector<8x1xi32>
    %5 = vector.broadcast %4 : vector<8x1xi32> to vector<8x44xi32>
    %6 = arith.cmpi eq, %0, %5 : vector<8x44xi32>
    %c0_i32_1 = arith.constant 0 : i32
    %7 = vector.broadcast %c0_i32_1 : i32 to vector<8x1xi32>
    %8 = arith.cmpi sge, %2, %7 : vector<8x1xi32>
    %9 = vector.broadcast %8 : vector<8x1xi1> to vector<8x44xi1>
    %10 = arith.andi %6, %9 : vector<8x44xi1>
    %c11_i32 = arith.constant 11 : i32
    %11 = vector.broadcast %c11_i32 : i32 to vector<8x1xi32>
    %12 = arith.cmpi slt, %2, %11 : vector<8x1xi32>
    %13 = vector.broadcast %12 : vector<8x1xi1> to vector<8x44xi1>
    %14 = arith.andi %10, %13 : vector<8x44xi1>
    %15 = arith.extui %14 : vector<8x44xi1> to vector<8x44xi32>
    %16 = arith.sitofp %15 : vector<8x44xi32> to vector<8x44xf32>
    %17 = arith.addf %1, %16 : vector<8x44xf32>
    %c0_2 = arith.constant 0 : index
    %c0_3 = arith.constant 0 : index
    %18 = vector.load %arg2[%c0_2, %c0_3] : memref<8x1xi32, #tpu.memory_space<vmem>>, vector<8x1xi32>
    %c11_i32_4 = arith.constant 11 : i32
    %19 = vector.broadcast %c11_i32_4 : i32 to vector<8x1xi32>
    %20 = arith.addi %18, %19 : vector<8x1xi32>
    %21 = vector.broadcast %20 : vector<8x1xi32> to vector<8x44xi32>
    %22 = arith.cmpi eq, %0, %21 : vector<8x44xi32>
    %c0_i32_5 = arith.constant 0 : i32
    %23 = vector.broadcast %c0_i32_5 : i32 to vector<8x1xi32>
    %24 = arith.cmpi sge, %18, %23 : vector<8x1xi32>
    %25 = vector.broadcast %24 : vector<8x1xi1> to vector<8x44xi1>
    %26 = arith.andi %22, %25 : vector<8x44xi1>
    %c11_i32_6 = arith.constant 11 : i32
    %27 = vector.broadcast %c11_i32_6 : i32 to vector<8x1xi32>
    %28 = arith.cmpi slt, %18, %27 : vector<8x1xi32>
    %29 = vector.broadcast %28 : vector<8x1xi1> to vector<8x44xi1>
    %30 = arith.andi %26, %29 : vector<8x44xi1>
    %31 = arith.extui %30 : vector<8x44xi1> to vector<8x44xi32>
    %32 = arith.sitofp %31 : vector<8x44xi32> to vector<8x44xf32>
    %33 = arith.addf %17, %32 : vector<8x44xf32>
    %c0_7 = arith.constant 0 : index
    %c0_8 = arith.constant 0 : index
    %34 = vector.load %arg3[%c0_7, %c0_8] : memref<8x1xi32, #tpu.memory_space<vmem>>, vector<8x1xi32>
    %c22_i32 = arith.constant 22 : i32
    %35 = vector.broadcast %c22_i32 : i32 to vector<8x1xi32>
    %36 = arith.addi %34, %35 : vector<8x1xi32>
    %37 = vector.broadcast %36 : vector<8x1xi32> to vector<8x44xi32>
    %38 = arith.cmpi eq, %0, %37 : vector<8x44xi32>
    %c0_i32_9 = arith.constant 0 : i32
    %39 = vector.broadcast %c0_i32_9 : i32 to vector<8x1xi32>
    %40 = arith.cmpi sge, %34, %39 : vector<8x1xi32>
    %41 = vector.broadcast %40 : vector<8x1xi1> to vector<8x44xi1>
    %42 = arith.andi %38, %41 : vector<8x44xi1>
    %c11_i32_10 = arith.constant 11 : i32
    %43 = vector.broadcast %c11_i32_10 : i32 to vector<8x1xi32>
    %44 = arith.cmpi slt, %34, %43 : vector<8x1xi32>
    %45 = vector.broadcast %44 : vector<8x1xi1> to vector<8x44xi1>
    %46 = arith.andi %42, %45 : vector<8x44xi1>
    %47 = arith.extui %46 : vector<8x44xi1> to vector<8x44xi32>
    %48 = arith.sitofp %47 : vector<8x44xi32> to vector<8x44xf32>
    %49 = arith.addf %33, %48 : vector<8x44xf32>
    %c0_11 = arith.constant 0 : index
    %c0_12 = arith.constant 0 : index
    %50 = vector.load %arg4[%c0_11, %c0_12] : memref<8x1xi32, #tpu.memory_space<vmem>>, vector<8x1xi32>
    %c33_i32 = arith.constant 33 : i32
    %51 = vector.broadcast %c33_i32 : i32 to vector<8x1xi32>
    %52 = arith.addi %50, %51 : vector<8x1xi32>
    %53 = vector.broadcast %52 : vector<8x1xi32> to vector<8x44xi32>
    %54 = arith.cmpi eq, %0, %53 : vector<8x44xi32>
    %c0_i32_13 = arith.constant 0 : i32
    %55 = vector.broadcast %c0_i32_13 : i32 to vector<8x1xi32>
    %56 = arith.cmpi sge, %50, %55 : vector<8x1xi32>
    %57 = vector.broadcast %56 : vector<8x1xi1> to vector<8x44xi1>
    %58 = arith.andi %54, %57 : vector<8x44xi1>
    %c11_i32_14 = arith.constant 11 : i32
    %59 = vector.broadcast %c11_i32_14 : i32 to vector<8x1xi32>
    %60 = arith.cmpi slt, %50, %59 : vector<8x1xi32>
    %61 = vector.broadcast %60 : vector<8x1xi1> to vector<8x44xi1>
    %62 = arith.andi %58, %61 : vector<8x44xi1>
    %63 = arith.extui %62 : vector<8x44xi1> to vector<8x44xi32>
    %64 = arith.sitofp %63 : vector<8x44xi32> to vector<8x44xf32>
    %65 = arith.addf %49, %64 : vector<8x44xf32>
    %c0_15 = arith.constant 0 : index
    %c0_16 = arith.constant 0 : index
    %66 = vector.load %arg5[%c0_15, %c0_16] : memref<44x128xf32, #tpu.memory_space<vmem>>, vector<44x128xf32>
    %cst_17 = arith.constant dense<0.000000e+00> : vector<8x128xf32>
    %67 = tpu.matmul %65, %66, %cst_17 {dimension_numbers = #tpu.dot_dimension_numbers<[1], [0], [0], [1], [0, 0, 1, 1], [], []>} : vector<8x44xf32>, vector<44x128xf32>, vector<8x128xf32> -> vector<8x128xf32>
    %c0_18 = arith.constant 0 : index
    %c0_19 = arith.constant 0 : index
    %68 = vector.load %arg6[%c0_18, %c0_19] : memref<8x128xf32, #tpu.memory_space<vmem>>, vector<8x128xf32>
    tpu.vector_store %arg6[%c0_18, %c0_19], %67 {strides = array<i32>} : memref<8x128xf32, #tpu.memory_space<vmem>>, vector<8x128xf32>,
    return
  }
  func.func @transform_0(%arg0: i32) -> (i32, i32) {
    %c0_i32 = arith.constant 0 : i32
    %c0_i32_0 = arith.constant 0 : i32
    return %arg0, %c0_i32 : i32, i32
  }
  func.func @transform_1(%arg0: i32) -> (i32, i32) {
    %c0_i32 = arith.constant 0 : i32
    %c0_i32_0 = arith.constant 0 : i32
    return %arg0, %c0_i32 : i32, i32
  }
  func.func @transform_2(%arg0: i32) -> (i32, i32) {
    %c0_i32 = arith.constant 0 : i32
    %c0_i32_0 = arith.constant 0 : i32
    return %arg0, %c0_i32 : i32, i32
  }
  func.func @transform_3(%arg0: i32) -> (i32, i32) {
    %c0_i32 = arith.constant 0 : i32
    %c0_i32_0 = arith.constant 0 : i32
    return %arg0, %c0_i32 : i32, i32
  }
  func.func @transform_4(%arg0: i32) -> (i32, i32) {
    %c0_i32 = arith.constant 0 : i32
    %c0_i32_0 = arith.constant 0 : i32
    %c0_i32_1 = arith.constant 0 : i32
    return %c0_i32, %c0_i32_0 : i32, i32
  }
  func.func @transform_5(%arg0: i32) -> (i32, i32) {
    %c0_i32 = arith.constant 0 : i32
    %c0_i32_0 = arith.constant 0 : i32
    return %arg0, %c0_i32 : i32, i32
  }
}

</mosaic_0001>

<llo_original>
// kernel: conditional_embedding.1
$region0: #{conditional_embedding.1}
  #allocation0 [shape = 'u32[]', space=smem, size = 0x4, offset = 0x4, fixed_abs, tag = 'smem constant byte address 0x4 - core index']
  #allocation1 [shape = 'u32[72,128]{1,0:T(1,128)}', space=vmem, size = 0x9000, scoped, tag = 'internal scratch']
  %s0 = inlined_call_operand.vmem [shape: s32[24,1], index: 0, kind: input, shape index: {}]
  %s1 = inlined_call_operand.vmem [shape: s32[24,1], index: 1, kind: input, shape index: {}]
  %s2 = inlined_call_operand.vmem [shape: s32[24,1], index: 2, kind: input, shape index: {}]
  %s3 = inlined_call_operand.vmem [shape: s32[24,1], index: 3, kind: input, shape index: {}]
  %s4 = inlined_call_operand.vmem [shape: f32[44,128], index: 4, kind: input, shape index: {}]
  %s5 = inlined_call_operand.vmem [shape: f32[24,128], index: 5, kind: output, shape index: {}]
  %s6 = sld [smem:[#allocation0]]
  $region53: #{conditional_embedding.1} parent=0
    _
  %s8 = ssub.s32 1, %s6
  %s9 = scalar_select 0, %s8, %s6
  loop: start=0, step=1, limit=5
  $region2: #{conditional_embedding.1} parent=0 // loop_pre_header
    _
  $region3: #{conditional_embedding.1} parent=0 // loop_header
    %s11 = sphi 0, %s15
    %p12 = scmp.ge.s32.totalorder %s11, 5
    %s21 = sphi 0, %s23
    %s24 = sphi 0, %s21
    %s25 = sphi 0, %s24
    %s41 = sphi 0, %s25
    %s47 = sphi 0, %s49
    %s50 = sphi 0, %s47
    %s51 = sphi 0, %s50
    %s67 = sphi 0, %s51
    %s73 = sphi 0, %s75
    %s76 = sphi 0, %s73
    %s77 = sphi 0, %s76
    %s93 = sphi 0, %s77
    %s99 = sphi 0, %s101
    %s102 = sphi 0, %s99
    %s103 = sphi 0, %s102
    %s119 = sphi 0, %s103
    %s123 = sphi 0, %s123
    %s125 = sphi 0, %s123
    %s126 = sphi 0, %s125
    %s140 = sphi 0, %s126
    %s146 = sphi 0, %s148
    %s149 = sphi 0, %s146
    %s150 = sphi 0, %s149
    %s166 = sphi 0, %s150
  $region4: #{conditional_embedding.1} parent=0 // loop_header_branch
    %14 = sbr.rel (%p12) target = $region8
  $region5: #{conditional_embedding.1} parent=0 // loop_body
    %s16 = ssub.s32 %s11, 1
    %s17 = ssub.s32 %s11, 2
    %s18 = sadd.s32 %s11, 1
    %s19 = ssub.s32 %s11, %s18
    %p20 = scmp.eq.s32.totalorder %s19, 0
    %s22 = sadd.s32 %s21, 1
    %s23 = scalar_select %p20, %s21, %s22
    %p26 = pneg %p20
    %p27 = scmp.eq.s32.totalorder %s11, 2
    %p28 = por %p26, %p27
    %p29 = scmp.ne.s32.totalorder %s21, %s24
    %p30 = scmp.eq.s32.totalorder %s11, 0
    %p31 = por %p29, %p30
    %p32 = scmp.ne.s32.totalorder %s21, %s24
    %p33 = scmp.eq.s32.totalorder %s16, 2
    %p34 = por %p32, %p33
    %p35 = scmp.ne.s32.totalorder %s24, %s25
    %p36 = scmp.eq.s32.totalorder %s16, 0
    %p37 = por %p35, %p36
    %p38 = scmp.ne.s32.totalorder %s24, %s25
    %p39 = scmp.eq.s32.totalorder %s17, 2
    %p40 = por %p38, %p39
    %p42 = scmp.ne.s32.totalorder %s25, %s41
    %p43 = scmp.eq.s32.totalorder %s17, 0
    %p44 = por %p42, %p43
    %s45 = ssub.s32 %s11, %s18
    %p46 = scmp.eq.s32.totalorder %s45, 0
    %s48 = sadd.s32 %s47, 1
    %s49 = scalar_select %p46, %s47, %s48
    %p52 = pneg %p46
    %p53 = scmp.eq.s32.totalorder %s11, 2
    %p54 = por %p52, %p53
    %p55 = scmp.ne.s32.totalorder %s47, %s50
    %p56 = scmp.eq.s32.totalorder %s11, 0
    %p57 = por %p55, %p56
    %p58 = scmp.ne.s32.totalorder %s47, %s50
    %p59 = scmp.eq.s32.totalorder %s16, 2
    %p60 = por %p58, %p59
    %p61 = scmp.ne.s32.totalorder %s50, %s51
    %p62 = scmp.eq.s32.totalorder %s16, 0
    %p63 = por %p61, %p62
    %p64 = scmp.ne.s32.totalorder %s50, %s51
    %p65 = scmp.eq.s32.totalorder %s17, 2
    %p66 = por %p64, %p65
    %p68 = scmp.ne.s32.totalorder %s51, %s67
    %p69 = scmp.eq.s32.totalorder %s17, 0
    %p70 = por %p68, %p69
    %s71 = ssub.s32 %s11, %s18
    %p72 = scmp.eq.s32.totalorder %s71, 0
    %s74 = sadd.s32 %s73, 1
    %s75 = scalar_select %p72, %s73, %s74
    %p78 = pneg %p72
    %p79 = scmp.eq.s32.totalorder %s11, 2
    %p80 = por %p78, %p79
    %p81 = scmp.ne.s32.totalorder %s73, %s76
    %p82 = scmp.eq.s32.totalorder %s11, 0
    %p83 = por %p81, %p82
    %p84 = scmp.ne.s32.totalorder %s73, %s76
    %p85 = scmp.eq.s32.totalorder %s16, 2
    %p86 = por %p84, %p85
    %p87 = scmp.ne.s32.totalorder %s76, %s77
    %p88 = scmp.eq.s32.totalorder %s16, 0
    %p89 = por %p87, %p88
    %p90 = scmp.ne.s32.totalorder %s76, %s77
    %p91 = scmp.eq.s32.totalorder %s17, 2
    %p92 = por %p90, %p91
    %p94 = scmp.ne.s32.totalorder %s77, %s93
    %p95 = scmp.eq.s32.totalorder %s17, 0
    %p96 = por %p94, %p95
    %s97 = ssub.s32 %s11, %s18
    %p98 = scmp.eq.s32.totalorder %s97, 0
    %s100 = sadd.s32 %s99, 1
    %s101 = scalar_select %p98, %s99, %s100
    %p104 = pneg %p98
    %p105 = scmp.eq.s32.totalorder %s11, 2
    %p106 = por %p104, %p105
    %p107 = scmp.ne.s32.totalorder %s99, %s102
    %p108 = scmp.eq.s32.totalorder %s11, 0
    %p109 = por %p107, %p108
    %p110 = scmp.ne.s32.totalorder %s99, %s102
    %p111 = scmp.eq.s32.totalorder %s16, 2
    %p112 = por %p110, %p111
    %p113 = scmp.ne.s32.totalorder %s102, %s103
    %p114 = scmp.eq.s32.totalorder %s16, 0
    %p115 = por %p113, %p114
    %p116 = scmp.ne.s32.totalorder %s102, %s103
    %p117 = scmp.eq.s32.totalorder %s17, 2
    %p118 = por %p116, %p117
    %p120 = scmp.ne.s32.totalorder %s103, %s119
    %p121 = scmp.eq.s32.totalorder %s17, 0
    %p122 = por %p120, %p121
    %s124 = sadd.s32 %s123, 1
    %p127 = scmp.eq.s32.totalorder %s11, 2
    %p128 = scmp.ne.s32.totalorder %s123, %s125
    %p129 = scmp.eq.s32.totalorder %s11, 0
    %p130 = por %p128, %p129
    %p131 = scmp.ne.s32.totalorder %s123, %s125
    %p132 = scmp.eq.s32.totalorder %s16, 2
    %p133 = por %p131, %p132
    %p134 = scmp.ne.s32.totalorder %s125, %s126
    %p135 = scmp.eq.s32.totalorder %s16, 0
    %p136 = por %p134, %p135
    %p137 = scmp.ne.s32.totalorder %s125, %s126
    %p138 = scmp.eq.s32.totalorder %s17, 2
    %p139 = por %p137, %p138
    %p141 = scmp.ne.s32.totalorder %s126, %s140
    %p142 = scmp.eq.s32.totalorder %s17, 0
    %p143 = por %p141, %p142
    %s144 = ssub.s32 %s11, %s18
    %p145 = scmp.eq.s32.totalorder %s144, 0
    %s147 = sadd.s32 %s146, 1
    %s148 = scalar_select %p145, %s146, %s147
    %p151 = pneg %p145
    %p152 = scmp.eq.s32.totalorder %s11, 2
    %p153 = por %p151, %p152
    %p154 = scmp.ne.s32.totalorder %s146, %s149
    %p155 = scmp.eq.s32.totalorder %s11, 0
    %p156 = por %p154, %p155
    %p157 = scmp.ne.s32.totalorder %s146, %s149
    %p158 = scmp.eq.s32.totalorder %s16, 2
    %p159 = por %p157, %p158
    %p160 = scmp.ne.s32.totalorder %s149, %s150
    %p161 = scmp.eq.s32.totalorder %s16, 0
    %p162 = por %p160, %p161
    %p163 = scmp.ne.s32.totalorder %s149, %s150
    %p164 = scmp.eq.s32.totalorder %s17, 2
    %p165 = por %p163, %p164
    %p167 = scmp.ne.s32.totalorder %s150, %s166
    %p168 = scmp.eq.s32.totalorder %s17, 0
    %p169 = por %p167, %p168
    %p170 = scmp.le.s32.totalorder 1, %s11
    %p171 = scmp.lt.s32.totalorder %s11, 4
    %p172 = pnand %p170, %p171
    %p173 = pneg %p172
    // Predicated region
    $region9: #{conditional_embedding.1} parent=5 // pred_check
      _
    $region10: #{conditional_embedding.1} parent=5 // pred_check_branch
      %175 = sbr.rel (%p172) target = $region12
    $region11: #{conditional_embedding.1} parent=5 // pred_region
      %s176 = ssub.s32 %s11, 1
      // Predicated region
      $region13: #{conditional_embedding.1} parent=11 // pred_check
        %p177 = pneg %p136
      $region14: #{conditional_embedding.1} parent=11 // pred_check_branch
        %179 = sbr.rel (%p177) target = $region16
      $region15: #{conditional_embedding.1} parent=11 // pred_region
        _
      $region16: #{conditional_embedding.1} parent=11 // pred_fallthru
        _
    $region12: #{conditional_embedding.1} parent=5 // pred_fallthru
      _
    %p180 = scmp.lt.s32.totalorder %s11, 3
    // Predicated region
    $region17: #{conditional_embedding.1} parent=5 // pred_check
      %p181 = pneg %p180
    $region18: #{conditional_embedding.1} parent=5 // pred_check_branch
      %183 = sbr.rel (%p181) target = $region20
    $region19: #{conditional_embedding.1} parent=5 // pred_region
      // Predicated region
      $region21: #{conditional_embedding.1} parent=19 // pred_check
        %p184 = pneg %p31
      $region22: #{conditional_embedding.1} parent=19 // pred_check_branch
        %186 = sbr.rel (%p184) target = $region24
      $region23: #{conditional_embedding.1} parent=19 // pred_region
        %p187 = scmp.lt.s32.totalorder %s11, 2
        %s188 = scalar_select %p187, %s11, 2
        %s189 = smul.addr %s188, 8
        %s190 = scalar_lea.vmem %s0, %s189
      $region24: #{conditional_embedding.1} parent=19 // pred_fallthru
        _
      // Predicated region
      $region25: #{conditional_embedding.1} parent=19 // pred_check
        %p191 = pneg %p57
      $region26: #{conditional_embedding.1} parent=19 // pred_check_branch
        %193 = sbr.rel (%p191) target = $region28
      $region27: #{conditional_embedding.1} parent=19 // pred_region
        %p194 = scmp.lt.s32.totalorder %s11, 2
        %s195 = scalar_select %p194, %s11, 2
        %s196 = smul.addr %s195, 8
        %s197 = scalar_lea.vmem %s1, %s196
      $region28: #{conditional_embedding.1} parent=19 // pred_fallthru
        _
      // Predicated region
      $region29: #{conditional_embedding.1} parent=19 // pred_check
        %p198 = pneg %p83
      $region30: #{conditional_embedding.1} parent=19 // pred_check_branch
        %200 = sbr.rel (%p198) target = $region32
      $region31: #{conditional_embedding.1} parent=19 // pred_region
        %p201 = scmp.lt.s32.totalorder %s11, 2
        %s202 = scalar_select %p201, %s11, 2
        %s203 = smul.addr %s202, 8
        %s204 = scalar_lea.vmem %s2, %s203
      $region32: #{conditional_embedding.1} parent=19 // pred_fallthru
        _
      // Predicated region
      $region33: #{conditional_embedding.1} parent=19 // pred_check
        %p205 = pneg %p109
      $region34: #{conditional_embedding.1} parent=19 // pred_check_branch
        %207 = sbr.rel (%p205) target = $region36
      $region35: #{conditional_embedding.1} parent=19 // pred_region
        %p208 = scmp.lt.s32.totalorder %s11, 2
        %s209 = scalar_select %p208, %s11, 2
        %s210 = smul.addr %s209, 8
        %s211 = scalar_lea.vmem %s3, %s210
      $region36: #{conditional_embedding.1} parent=19 // pred_fallthru
        _
    $region20: #{conditional_embedding.1} parent=5 // pred_fallthru
      _
    %p212 = scmp.le.s32.totalorder 1, %s11
    %p213 = scmp.lt.s32.totalorder %s11, 4
    %p214 = pnand %p212, %p213
    %p215 = pneg %p214
    // Predicated region
    $region37: #{conditional_embedding.1} parent=5 // pred_check
      _
    $region38: #{conditional_embedding.1} parent=5 // pred_check_branch
      %217 = sbr.rel (%p214) target = $region40
    $region39: #{conditional_embedding.1} parent=5 // pred_region
      %s218 = ssub.s32 %s11, 1
      %p219 = scmp.lt.s32.totalorder %s16, 2
      %s220 = scalar_select %p219, %s16, 2
      %s221 = smul.addr %s220, 8
      %s222 = scalar_lea.vmem %s0, %s221
      %p223 = pneg %p37
      %p224 = pneg %p34
      %p225 = scmp.lt.s32.totalorder %s16, 2
      %s226 = scalar_select %p225, %s16, 2
      %s227 = smul.addr %s226, 8
      %s228 = scalar_lea.vmem %s1, %s227
      %p229 = pneg %p63
      %p230 = pneg %p60
      %p231 = scmp.lt.s32.totalorder %s16, 2
      %s232 = scalar_select %p231, %s16, 2
      %s233 = smul.addr %s232, 8
      %s234 = scalar_lea.vmem %s2, %s233
      %p235 = pneg %p89
      %p236 = pneg %p86
      %p237 = scmp.lt.s32.totalorder %s16, 2
      %s238 = scalar_select %p237, %s16, 2
      %s239 = smul.addr %s238, 8
      %s240 = scalar_lea.vmem %s3, %s239
      %p241 = pneg %p115
      %p242 = pneg %p112
      %p243 = pneg %p136
      %p244 = pneg %p133
      %p245 = pneg %p162
      %p246 = pneg %p159
      %p247 = scmp.lt.s32.totalorder %s16, 2
      %s248 = scalar_select %p247, %s16, 2
      %s249 = smul.addr %s248, 8
      %s250 = scalar_lea.vmem %s5, %s249
      %p251 = scmp.lt.s32.totalorder %s16, 2
      %s252 = scalar_select %p251, %s16, 2
      %s253 = smul.addr %s252, 8
      %s254 = scalar_lea.vmem %s0, %s253
      %p255 = scmp.lt.s32.totalorder %s16, 2
      %s256 = scalar_select %p255, %s16, 2
      %s257 = smul.addr %s256, 8
      %s258 = scalar_lea.vmem %s1, %s257
      %p259 = scmp.lt.s32.totalorder %s16, 2
      %s260 = scalar_select %p259, %s16, 2
      %s261 = smul.addr %s260, 8
      %s262 = scalar_lea.vmem %s2, %s261
      %p263 = scmp.lt.s32.totalorder %s16, 2
      %s264 = scalar_select %p263, %s16, 2
      %s265 = smul.addr %s264, 8
      %s266 = scalar_lea.vmem %s3, %s265
      %p267 = scmp.lt.s32.totalorder %s16, 2
      %s268 = scalar_select %p267, %s16, 2
      %s269 = smul.addr %s268, 8
      %s270 = scalar_lea.vmem %s5, %s269
      %v271 = vlaneseq
      %v272 = vand.u32 %v271, 127
      %v273 = vld [vmem:[%s254] sm:$0xff]
      %274 = vset.pattern.permute.xlu0 0
      %275 = vperm.xlu0 %274, %v273
      %v276 = vpop.permute.xlu0 %275
      %vm277 = vcmp.eq.s32.totalorder %v272, %v276
      %vm278 = vcmp.ge.s32.totalorder %v273, 0
      %v279 = vsel %vm278, 1, 0
      %280 = vset.pattern.permute.xlu0 0
      %281 = vperm.xlu0 %280, %v279
      %v282 = vpop.permute.xlu0 %281
      %vm283 = vcmp.eq.s32.totalorder %v282, 1
      %vm284 = vmand %vm277, %vm283
      %vm285 = vcmp.lt.s32.totalorder %v273, 11
      %v286 = vsel %vm285, 1, 0
      %287 = vset.pattern.permute.xlu0 0
      %288 = vperm.xlu0 %287, %v286
      %v289 = vpop.permute.xlu0 %288
      %vm290 = vcmp.eq.s32.totalorder %v289, 1
      %vm291 = vmand %vm284, %vm290
      %v292 = vsel %vm291, 1, 0
      %v293 = vcvt.s32.f32 %v292
      %v294 = vadd.f32 %v293, 0.0
      %v295 = vld [vmem:[%s258] sm:$0xff]
      %v296 = vadd.s32 %v295, 11
      %297 = vset.pattern.permute.xlu0 0
      %298 = vperm.xlu0 %297, %v296
      %v299 = vpop.permute.xlu0 %298
      %vm300 = vcmp.eq.s32.totalorder %v272, %v299
      %vm301 = vcmp.ge.s32.totalorder %v295, 0
      %v302 = vsel %vm301, 1, 0
      %303 = vset.pattern.permute.xlu0 0
      %304 = vperm.xlu0 %303, %v302
      %v305 = vpop.permute.xlu0 %304
      %vm306 = vcmp.eq.s32.totalorder %v305, 1
      %vm307 = vmand %vm300, %vm306
      %vm308 = vcmp.lt.s32.totalorder %v295, 11
      %v309 = vsel %vm308, 1, 0
      %310 = vset.pattern.permute.xlu0 0
      %311 = vperm.xlu0 %310, %v309
      %v312 = vpop.permute.xlu0 %311
      %vm313 = vcmp.eq.s32.totalorder %v312, 1
      %vm314 = vmand %vm307, %vm313
      %v315 = vsel %vm314, 1, 0
      %v316 = vcvt.s32.f32 %v315
      %v317 = vadd.f32 %v294, %v316
      %v318 = vld [vmem:[%s262] sm:$0xff]
      %v319 = vadd.s32 %v318, 22
      %320 = vset.pattern.permute.xlu0 0
      %321 = vperm.xlu0 %320, %v319
      %v322 = vpop.permute.xlu0 %321
      %vm323 = vcmp.eq.s32.totalorder %v272, %v322
      %vm324 = vcmp.ge.s32.totalorder %v318, 0
      %v325 = vsel %vm324, 1, 0
      %326 = vset.pattern.permute.xlu0 0
      %327 = vperm.xlu0 %326, %v325
      %v328 = vpop.permute.xlu0 %327
      %vm329 = vcmp.eq.s32.totalorder %v328, 1
      %vm330 = vmand %vm323, %vm329
      %vm331 = vcmp.lt.s32.totalorder %v318, 11
      %v332 = vsel %vm331, 1, 0
      %333 = vset.pattern.permute.xlu0 0
      %334 = vperm.xlu0 %333, %v332
      %v335 = vpop.permute.xlu0 %334
      %vm336 = vcmp.eq.s32.totalorder %v335, 1
      %vm337 = vmand %vm330, %vm336
      %v338 = vsel %vm337, 1, 0
      %v339 = vcvt.s32.f32 %v338
      %v340 = vadd.f32 %v317, %v339
      %v341 = vld [vmem:[%s266] sm:$0xff]
      %v342 = vadd.s32 %v341, 33
      %343 = vset.pattern.permute.xlu0 0
      %344 = vperm.xlu0 %343, %v342
      %v345 = vpop.permute.xlu0 %344
      %vm346 = vcmp.eq.s32.totalorder %v272, %v345
      %vm347 = vcmp.ge.s32.totalorder %v341, 0
      %v348 = vsel %vm347, 1, 0
      %349 = vset.pattern.permute.xlu0 0
      %350 = vperm.xlu0 %349, %v348
      %v351 = vpop.permute.xlu0 %350
      %vm352 = vcmp.eq.s32.totalorder %v351, 1
      %vm353 = vmand %vm346, %vm352
      %vm354 = vcmp.lt.s32.totalorder %v341, 11
      %v355 = vsel %vm354, 1, 0
      %356 = vset.pattern.permute.xlu0 0
      %357 = vperm.xlu0 %356, %v355
      %v358 = vpop.permute.xlu0 %357
      %vm359 = vcmp.eq.s32.totalorder %v358, 1
      %vm360 = vmand %vm353, %vm359
      %v361 = vsel %vm360, 1, 0
      %v362 = vcvt.s32.f32 %v361
      %v363 = vadd.f32 %v340, %v362
      %v364 = vld [vmem:[%s4] sm:$0xff]
      %v365 = vld [vmem:[%s4 + $0x8] sm:$0xff]
      %v366 = vld [vmem:[%s4 + $0x10] sm:$0xff]
      %v367 = vld [vmem:[%s4 + $0x18] sm:$0xff]
      %v368 = vld [vmem:[%s4 + $0x20] sm:$0xff]
      %v369 = vld [vmem:[%s4 + $0x28] sm:$0xf]
      %vm370 = vcmask 359424
      %v372 = vsel %vm370, %v363, 0
      %vm374 = vcmask 1043456
      %v376 = vsel %vm374, %v369, 0
      %378 = vmatpush.msra.mxu0 0.0
      %379 = vmatpush.msra.mxu0 0.0
      %380 = vmatpush.msra.mxu0 0.0
      %381 = vmatpush.msra.mxu0 0.0
      %382 = vmatpush.msra.mxu0 0.0
      %383 = vmatpush.msra.mxu0 0.0
      %384 = vmatpush.msra.mxu0 0.0
      %385 = vmatpush.msra.mxu0 0.0
      %386 = vmatpush.msra.mxu0 0.0
      %387 = vmatpush.msra.mxu0 0.0
      %388 = vmatpush.msra.mxu0 %v376
      %389 = vmatpush.msra.mxu0 %v368
      %390 = vmatpush.msra.mxu0 %v367
      %391 = vmatpush.msra.mxu0 %v366
      %392 = vmatpush.msra.mxu0 %v365
      %393 = vmatpush.msra.mxu0 %v364
      %394 = vmatmul.f32.gmra.mxu0 %v372
      %v395 = vpop.f32.mrf.mxu0
      %v396 = vadd.f32 0.0, %v395
      %397 = vdwg.mxu0
      %398 = vst [vmem:[%s270] sm:$0xff] %v396
      %p399 = scmp.lt.s32.totalorder %s16, 2
      %s400 = scalar_select %p399, %s16, 2
      %s401 = smul.addr %s400, 8
      %s402 = scalar_lea.vmem %s5, %s401
      // Predicated region
      $region41: #{conditional_embedding.1} parent=39 // pred_check
        %p403 = pneg %p159
      $region42: #{conditional_embedding.1} parent=39 // pred_check_branch
        %405 = sbr.rel (%p403) target = $region44
      $region43: #{conditional_embedding.1} parent=39 // pred_region
        _
      $region44: #{conditional_embedding.1} parent=39 // pred_fallthru
        _
    $region40: #{conditional_embedding.1} parent=5 // pred_fallthru
      _
    %p406 = scmp.le.s32.totalorder 2, %s11
    // Predicated region
    $region45: #{conditional_embedding.1} parent=5 // pred_check
      %p407 = pneg %p406
    $region46: #{conditional_embedding.1} parent=5 // pred_check_branch
      %409 = sbr.rel (%p407) target = $region48
    $region47: #{conditional_embedding.1} parent=5 // pred_region
      %s410 = ssub.s32 %s11, 2
      // Predicated region
      $region49: #{conditional_embedding.1} parent=47 // pred_check
        %p411 = pneg %p165
      $region50: #{conditional_embedding.1} parent=47 // pred_check_branch
        %413 = sbr.rel (%p411) target = $region52
      $region51: #{conditional_embedding.1} parent=47 // pred_region
        %p414 = scmp.lt.s32.totalorder %s17, 2
        %s415 = scalar_select %p414, %s17, 2
        %s416 = smul.addr %s415, 8
        %s417 = scalar_lea.vmem %s5, %s416
      $region52: #{conditional_embedding.1} parent=47 // pred_fallthru
        _
    $region48: #{conditional_embedding.1} parent=5 // pred_fallthru
      _
  $region6: #{conditional_embedding.1} parent=0 // loop_footer
    %s15 = sadd.s32 1, %s11
  $region7: #{conditional_embedding.1} parent=0 // loop_footer_branch
    %10 = sbr.rel target = $region3
  $region8: #{conditional_embedding.1} parent=0 // loop_exit
    _

</llo_original>
